<compile_context>
chip_gen: v6e
topology: v6e:2x2x1
jax: 0.10.0
libtpu: 0.0.40
codegen_flags: <defaults>
</compile_context>

<pallas_src>
import functools

import jax
import jax.numpy as jnp
from jax import lax
from jax.experimental import pallas as pl
from jax.experimental.pallas import tpu as pltpu

EPS = 1e-5


def _round_up(x, m):
    return (x + m - 1) // m * m


# ----------------------------- Pallas kernel -------------------------------

def _conblock_kernel(x_ref, w1_ref, b1_ref, w2_ref, b2_ref, w3_ref, ws_ref,
                     bf_ref, o_ref, hpad_ref, *, xw):
    """Fused ConBlock forward for one batch element (dense-lane layout).

    x_ref   : (1, Ho, strides*W*cin)  row h packs `strides` consecutive input
              rows; lanes [0, xw) hold the stride-selected input row strides*h.
    w1_ref  : (W*cin, P1)    1x1 stride-s conv; BN1 scale, W-subsample and the
                             3x3 input's W zero-padding are folded in.
    b1_ref  : (1, P1)
    w2_ref  : (3*P1, Wo*c1)  3x3 conv as a single im2col matmul (BN2 folded).
    b2_ref  : (1, Wo*c1)
    w3_ref  : (Wo*c1, Wo*c2) final 1x1 conv (BN3 folded, block-diagonal).
    ws_ref  : (W*cin, Wo*c2) shortcut 1x1 stride-s conv (BN4 folded).
    bf_ref  : (1, Wo*c2)     combined final + shortcut bias.
    o_ref   : (1, Ho, Wo*c2) lane-dense output block (Wo*c2 == 128 here).
    hpad_ref: VMEM scratch (Ho+2, P1): H-zero-padded input of the 3x3 conv.
    """
    Ho = o_ref.shape[1]
    xrows = x_ref[0][:, :xw]                                    # (Ho, W*cin)

    # ---- 1x1 stride-s conv + BN + ReLU (scale folded into w1) ------------
    h1 = jnp.dot(xrows, w1_ref[...], preferred_element_type=jnp.float32)
    h1 = jnp.maximum(h1 + b1_ref[...], 0.0)                     # (Ho, P1)

    # ---- zero-pad along H into VMEM scratch -------------------------------
    hpad_ref[...] = jnp.zeros_like(hpad_ref)
    hpad_ref[1:Ho + 1, :] = h1

    # ---- 3x3 conv + BN + ReLU as ONE im2col matmul (K = 3*P1) -------------
    patches = jnp.concatenate(
        [hpad_ref[kh:kh + Ho, :] for kh in range(3)], axis=1)   # (Ho, 3*P1)
    h2 = jnp.dot(patches, w2_ref[...], preferred_element_type=jnp.float32)
    h2 = jnp.maximum(h2 + b2_ref[...], 0.0)                     # (Ho, Wo*c1)

    # ---- final 1x1 conv + BN, shortcut 1x1 conv + BN, add, ReLU -----------
    y = jnp.dot(h2, w3_ref[...], preferred_element_type=jnp.float32)
    y = y + jnp.dot(xrows, ws_ref[...], preferred_element_type=jnp.float32)
    y = jnp.maximum(y + bf_ref[...], 0.0)                       # (Ho, Wo*c2)
    o_ref[0] = y.astype(o_ref.dtype)


# ------------------- BN folding + block-weight construction -----------------

def _fold_bn(gamma, beta, mean, var, conv_bias):
    s = gamma / jnp.sqrt(var + EPS)
    return s, s * (conv_bias - mean) + beta


def _build_block_weights(p, H, W, cin, strides):
    """Host-side, one-time construction of the block-structured weights.

    Kernel activation layout: rows = output H position, lanes = (w, channel).
    Stride-s column selection, the 3x3 W-direction taps and the W
    zero-padding are all expressed as block structure in these matrices.
    """
    c0 = p["w1"].shape[-1]
    c1 = p["w2"].shape[-1]
    c2 = p["w3"].shape[-1]
    Ho, Wo = H // strides, W // strides

    s1, b1 = _fold_bn(*p["bn1"], p["b1"])
    s2, b2 = _fold_bn(*p["bn2"], p["b2"])
    s3, b3 = _fold_bn(*p["bn3"], p["b3"])
    ss, bs = _fold_bn(*p["bn4"], p["bs"])

    w1 = p["w1"][0, 0] * s1[None, :]                  # (cin, c0)
    w2 = p["w2"] * s2[None, None, None, :]            # (3, 3, c0, c1)
    w3 = p["w3"][0, 0] * s3[None, :]                  # (c1, c2)
    ws = p["ws"][0, 0] * ss[None, :]                  # (cin, c2)

    # dense padded-row width, rounded to 128 lanes so im2col concat is aligned
    P1 = _round_up((Wo + 2) * c0, 128)
    wi = jnp.arange(Wo)

    # stage 1: rows (w_in, k) -> cols (wp, c); w_in = strides*w_out, wp = w_out+1
    W1 = jnp.zeros((W, cin, Wo + 2, c0), jnp.float32)
    W1 = W1.at[strides * wi, :, 1 + wi, :].set(
        jnp.broadcast_to(w1, (Wo, cin, c0)))
    W1p = jnp.zeros((W * cin, P1), jnp.float32)
    W1p = W1p.at[:, :(Wo + 2) * c0].set(W1.reshape(W * cin, (Wo + 2) * c0))
    B1 = jnp.zeros((Wo + 2, c0), jnp.float32).at[1:Wo + 1, :].set(
        jnp.broadcast_to(b1, (Wo, c0)))
    B1p = jnp.zeros((1, P1), jnp.float32).at[0, :(Wo + 2) * c0].set(
        B1.reshape(-1))

    # stage 2 (3x3 conv, im2col): rows (kh, wp, k) -> cols (w_out, c)
    W2 = jnp.zeros((3, Wo + 2, c0, Wo, c1), jnp.float32)
    for kh in range(3):
        for kw in range(3):
            W2 = W2.at[kh, wi + kw, :, wi, :].set(
                jnp.broadcast_to(w2[kh, kw], (Wo, c0, c1)))
    W2 = W2.reshape(3, (Wo + 2) * c0, Wo * c1)
    W2p = jnp.zeros((3, P1, Wo * c1), jnp.float32)
    W2p = W2p.at[:, :(Wo + 2) * c0, :].set(W2).reshape(3 * P1, Wo * c1)
    B2 = jnp.broadcast_to(b2, (Wo, c1)).reshape(1, Wo * c1)

    # stage 3: final 1x1 conv (block diagonal) + shortcut 1x1 stride-s conv
    W3 = jnp.zeros((Wo, c1, Wo, c2), jnp.float32)
    W3 = W3.at[wi, :, wi, :].set(jnp.broadcast_to(w3, (Wo, c1, c2)))
    W3 = W3.reshape(Wo * c1, Wo * c2)
    WS = jnp.zeros((W, cin, Wo, c2), jnp.float32)
    WS = WS.at[strides * wi, :, wi, :].set(jnp.broadcast_to(ws, (Wo, cin, c2)))
    WS = WS.reshape(W * cin, Wo * c2)
    BF = jnp.broadcast_to(b3 + bs, (Wo, c2)).reshape(1, Wo * c2)

    return W1p, B1p, W2p, B2, W3, WS, BF, P1


# ------------------------------- forward -----------------------------------

def con_block_forward(x_nchw, p, strides=2):
    # NCHW at the API boundary, dense (h, w*c) lane layout inside the kernel.
    N, cin, H, W = x_nchw.shape
    assert H % strides == 0 and W % strides == 0, "spatial dims must divide stride"
    c2 = p["w3"].shape[-1]
    c1 = p["w2"].shape[-1]
    Ho, Wo = H // strides, W // strides

    W1p, B1p, W2p, B2, W3, WS, BF, P1 = _build_block_weights(p, H, W, cin, strides)

    # NCHW -> NHWC -> (N, Ho, strides*W*cin): contiguous reshape, so no
    # subsampled copy of x is materialized; odd rows are dropped in-kernel.
    x = jnp.transpose(x_nchw, (0, 2, 3, 1)).reshape(N, Ho, strides * W * cin)
    xw = W * cin

    out = pl.pallas_call(
        functools.partial(_conblock_kernel, xw=xw),
        out_shape=jax.ShapeDtypeStruct((N, Ho, Wo * c2), jnp.float32),
        grid=(N,),
        in_specs=[
            pl.BlockSpec((1, Ho, strides * W * cin), lambda n: (n, 0, 0)),
            pl.BlockSpec(W1p.shape, lambda n: (0, 0)),
            pl.BlockSpec(B1p.shape, lambda n: (0, 0)),
            pl.BlockSpec(W2p.shape, lambda n: (0, 0)),
            pl.BlockSpec(B2.shape, lambda n: (0, 0)),
            pl.BlockSpec(W3.shape, lambda n: (0, 0)),
            pl.BlockSpec(WS.shape, lambda n: (0, 0)),
            pl.BlockSpec(BF.shape, lambda n: (0, 0)),
        ],
        out_specs=pl.BlockSpec((1, Ho, Wo * c2), lambda n: (n, 0, 0)),
        scratch_shapes=[pltpu.VMEM((Ho + 2, P1), jnp.float32)],
        compiler_params=pltpu.CompilerParams(
            dimension_semantics=("parallel",)),
    )(x, W1p, B1p, W2p, B2, W3, WS, BF)

    # (N, Ho, Wo*c2) is already NHWC flat order -> free reshape, then to NCHW.
    out = out.reshape(N, Ho, Wo, c2)
    return jnp.transpose(out, (0, 3, 1, 2))


# ------------------------ parameter init + reference ------------------------

def init_params(key, cin, channels):
    c0, c1, c2 = channels
    ks = jax.random.split(key, 24)

    def u(k, shape, lim=0.1):
        return jax.random.uniform(k, shape, jnp.float32, -lim, lim)

    def bn(k, c):
        k1, k2, k3, k4 = jax.random.split(k, 4)
        gamma = jax.random.uniform(k1, (c,), jnp.float32, 0.5, 1.5)
        beta = u(k2, (c,))
        mean = u(k3, (c,))
        var = jax.random.uniform(k4, (c,), jnp.float32, 0.5, 1.5)
        return gamma, beta, mean, var

    return dict(
        w1=u(ks[0], (1, 1, cin, c0)), b1=u(ks[1], (c0,)), bn1=bn(ks[2], c0),
        w2=u(ks[3], (3, 3, c0, c1)), b2=u(ks[4], (c1,)), bn2=bn(ks[5], c1),
        w3=u(ks[6], (1, 1, c1, c2)), b3=u(ks[7], (c2,)), bn3=bn(ks[8], c2),
        ws=u(ks[9], (1, 1, cin, c2)), bs=u(ks[10], (c2,)), bn4=bn(ks[11], c2),
    )


def ref_forward(x_nchw, p, strides=2):
    x = jnp.transpose(x_nchw, (0, 2, 3, 1))
    dn = ("NHWC", "HWIO", "NHWC")

    def conv(inp, w, b, stride, padding):
        y = lax.conv_general_dilated(inp, w, (stride, stride), padding,
                                     dimension_numbers=dn,
                                     precision=lax.Precision.HIGHEST)
        return y + b

    def bn(inp, stats):
        g, bt, m, v = stats
        return g * (inp - m) / jnp.sqrt(v + EPS) + bt

    y = jnp.maximum(bn(conv(x, p["w1"], p["b1"], strides, "VALID"), p["bn1"]), 0.0)
    y = jnp.maximum(bn(conv(y, p["w2"], p["b2"], 1, ((1, 1), (1, 1))), p["bn2"]), 0.0)
    y = bn(conv(y, p["w3"], p["b3"], 1, "VALID"), p["bn3"])
    sc = bn(conv(x, p["ws"], p["bs"], strides, "VALID"), p["bn4"])
    out = jnp.maximum(y + sc, 0.0)
    return jnp.transpose(out, (0, 3, 1, 2))


# --------------------------------- main --------------------------------------

if __name__ == "__main__":
    key = jax.random.PRNGKey(0)
    kparam, kx = jax.random.split(key)

    input_channel = 4
    channels = (8, 8, 16)
    strides = 2

    params = init_params(kparam, input_channel, channels)
    x = jax.random.normal(kx, (2, input_channel, 16, 16), jnp.float32)   # NCHW

    out = con_block_forward(x, params, strides=strides)
    out = jax.block_until_ready(out)

    ref = ref_forward(x, params, strides=strides)
    assert out.shape == ref.shape == (2, channels[2], 8, 8), (out.shape, ref.shape)
    # Tolerance covers default MXU matmul precision vs. the HIGHEST-precision
    # f32 reference.
    err = float(jnp.max(jnp.abs(out - ref)))
    assert jnp.allclose(out, ref, atol=5e-3, rtol=5e-3), err

    print("KERNEL_OK")
</pallas_src>

<mosaic_0001>
module attributes {stable_mosaic.version = 11 : i64} {
  func.func @_conblock_kernel(%arg0: i32, %arg1: memref<1x8x128xf32, #tpu.memory_space<vmem>>, %arg2: memref<64x128xf32, #tpu.memory_space<vmem>>, %arg3: memref<1x128xf32, #tpu.memory_space<vmem>>, %arg4: memref<384x64xf32, #tpu.memory_space<vmem>>, %arg5: memref<1x64xf32, #tpu.memory_space<vmem>>, %arg6: memref<64x128xf32, #tpu.memory_space<vmem>>, %arg7: memref<64x128xf32, #tpu.memory_space<vmem>>, %arg8: memref<1x128xf32, #tpu.memory_space<vmem>>, %arg9: memref<1x8x128xf32, #tpu.memory_space<vmem>>, %arg10: memref<10x128xf32, #tpu.memory_space<vmem>>) attributes {dimension_semantics = [#tpu.dimension_semantics<parallel>], iteration_bounds = array<i64: 2>, scalar_prefetch = 0 : i64, scratch_operands = 1 : i64, tpu.core_type = #tpu.core_type<tc>, window_params = [{transform_indices = @transform_0, window_bounds = array<i64: 1, 8, 128>}, {pipeline_mode = #tpu.pipeline_mode<synchronous>, transform_indices = @transform_1, window_bounds = array<i64: 64, 128>}, {pipeline_mode = #tpu.pipeline_mode<synchronous>, transform_indices = @transform_2, window_bounds = array<i64: 1, 128>}, {pipeline_mode = #tpu.pipeline_mode<synchronous>, transform_indices = @transform_3, window_bounds = array<i64: 384, 64>}, {pipeline_mode = #tpu.pipeline_mode<synchronous>, transform_indices = @transform_4, window_bounds = array<i64: 1, 64>}, {pipeline_mode = #tpu.pipeline_mode<synchronous>, transform_indices = @transform_5, window_bounds = array<i64: 64, 128>}, {pipeline_mode = #tpu.pipeline_mode<synchronous>, transform_indices = @transform_6, window_bounds = array<i64: 64, 128>}, {pipeline_mode = #tpu.pipeline_mode<synchronous>, transform_indices = @transform_7, window_bounds = array<i64: 1, 128>}, {transform_indices = @transform_8, window_bounds = array<i64: 1, 8, 128>}]} {
    %c0 = arith.constant 0 : index
    %c0_0 = arith.constant 0 : index
    %c0_1 = arith.constant 0 : index
    %0 = vector.load %arg1[%c0, %c0_0, %c0_1] : memref<1x8x128xf32, #tpu.memory_space<vmem>>, vector<1x8x128xf32>
    %1 = vector.shape_cast %0 : vector<1x8x128xf32> to vector<8x128xf32>
    %2 = vector.extract_strided_slice %1 {offsets = [0, 0], sizes = [8, 64], strides = [1, 1]} : vector<8x128xf32> to vector<8x64xf32>
    %c0_2 = arith.constant 0 : index
    %c0_3 = arith.constant 0 : index
    %3 = vector.load %arg2[%c0_2, %c0_3] : memref<64x128xf32, #tpu.memory_space<vmem>>, vector<64x128xf32>
    %cst = arith.constant dense<0.000000e+00> : vector<8x128xf32>
    %4 = tpu.matmul %2, %3, %cst {dimension_numbers = #tpu.dot_dimension_numbers<[1], [0], [0], [1], [0, 0, 1, 1], [], []>} : vector<8x64xf32>, vector<64x128xf32>, vector<8x128xf32> -> vector<8x128xf32>
    %c0_4 = arith.constant 0 : index
    %c0_5 = arith.constant 0 : index
    %5 = vector.load %arg3[%c0_4, %c0_5] : memref<1x128xf32, #tpu.memory_space<vmem>>, vector<1x128xf32>
    %6 = vector.broadcast %5 : vector<1x128xf32> to vector<8x128xf32>
    %7 = arith.addf %4, %6 : vector<8x128xf32>
    %cst_6 = arith.constant 0.000000e+00 : f32
    %8 = vector.broadcast %cst_6 : f32 to vector<8x128xf32>
    %9 = arith.maximumf %7, %8 : vector<8x128xf32>
    %cst_7 = arith.constant 0.000000e+00 : f32
    %10 = vector.broadcast %cst_7 : f32 to vector<10x128xf32>
    %c0_8 = arith.constant 0 : index
    %c0_9 = arith.constant 0 : index
    %11 = vector.load %arg10[%c0_8, %c0_9] : memref<10x128xf32, #tpu.memory_space<vmem>>, vector<10x128xf32>
    tpu.vector_store %arg10[%c0_8, %c0_9], %10 {strides = array<i32>} : memref<10x128xf32, #tpu.memory_space<vmem>>, vector<10x128xf32>,
    %c1 = arith.constant 1 : index
    %c0_10 = arith.constant 0 : index
    %12 = vector.load %arg10[%c1, %c0_10] : memref<10x128xf32, #tpu.memory_space<vmem>>, vector<8x128xf32>
    tpu.vector_store %arg10[%c1, %c0_10], %9 {strides = array<i32>} : memref<10x128xf32, #tpu.memory_space<vmem>>, vector<8x128xf32>,
    %c0_11 = arith.constant 0 : index
    %c0_12 = arith.constant 0 : index
    %13 = vector.load %arg10[%c0_11, %c0_12] : memref<10x128xf32, #tpu.memory_space<vmem>>, vector<8x128xf32>
    %c1_13 = arith.constant 1 : index
    %c0_14 = arith.constant 0 : index
    %14 = vector.load %arg10[%c1_13, %c0_14] : memref<10x128xf32, #tpu.memory_space<vmem>>, vector<8x128xf32>
    %c2 = arith.constant 2 : index
    %c0_15 = arith.constant 0 : index
    %15 = vector.load %arg10[%c2, %c0_15] : memref<10x128xf32, #tpu.memory_space<vmem>>, vector<8x128xf32>
    %16 = tpu.concatenate %13, %14, %15 in 1 : vector<8x128xf32>, vector<8x128xf32>, vector<8x128xf32> -> vector<8x384xf32>
    %c0_16 = arith.constant 0 : index
    %c0_17 = arith.constant 0 : index
    %17 = vector.load %arg4[%c0_16, %c0_17] : memref<384x64xf32, #tpu.memory_space<vmem>>, vector<384x64xf32>
    %cst_18 = arith.constant dense<0.000000e+00> : vector<8x64xf32>
    %18 = tpu.matmul %16, %17, %cst_18 {dimension_numbers = #tpu.dot_dimension_numbers<[1], [0], [0], [1], [0, 0, 1, 1], [], []>} : vector<8x384xf32>, vector<384x64xf32>, vector<8x64xf32> -> vector<8x64xf32>
    %c0_19 = arith.constant 0 : index
    %c0_20 = arith.constant 0 : index
    %19 = vector.load %arg5[%c0_19, %c0_20] : memref<1x64xf32, #tpu.memory_space<vmem>>, vector<1x64xf32>
    %20 = vector.broadcast %19 : vector<1x64xf32> to vector<8x64xf32>
    %21 = arith.addf %18, %20 : vector<8x64xf32>
    %cst_21 = arith.constant 0.000000e+00 : f32
    %22 = vector.broadcast %cst_21 : f32 to vector<8x64xf32>
    %23 = arith.maximumf %21, %22 : vector<8x64xf32>
    %c0_22 = arith.constant 0 : index
    %c0_23 = arith.constant 0 : index
    %24 = vector.load %arg6[%c0_22, %c0_23] : memref<64x128xf32, #tpu.memory_space<vmem>>, vector<64x128xf32>
    %cst_24 = arith.constant dense<0.000000e+00> : vector<8x128xf32>
    %25 = tpu.matmul %23, %24, %cst_24 {dimension_numbers = #tpu.dot_dimension_numbers<[1], [0], [0], [1], [0, 0, 1, 1], [], []>} : vector<8x64xf32>, vector<64x128xf32>, vector<8x128xf32> -> vector<8x128xf32>
    %c0_25 = arith.constant 0 : index
    %c0_26 = arith.constant 0 : index
    %26 = vector.load %arg7[%c0_25, %c0_26] : memref<64x128xf32, #tpu.memory_space<vmem>>, vector<64x128xf32>
    %cst_27 = arith.constant dense<0.000000e+00> : vector<8x128xf32>
    %27 = tpu.matmul %2, %26, %cst_27 {dimension_numbers = #tpu.dot_dimension_numbers<[1], [0], [0], [1], [0, 0, 1, 1], [], []>} : vector<8x64xf32>, vector<64x128xf32>, vector<8x128xf32> -> vector<8x128xf32>
    %28 = arith.addf %25, %27 : vector<8x128xf32>
    %c0_28 = arith.constant 0 : index
    %c0_29 = arith.constant 0 : index
    %29 = vector.load %arg8[%c0_28, %c0_29] : memref<1x128xf32, #tpu.memory_space<vmem>>, vector<1x128xf32>
    %30 = vector.broadcast %29 : vector<1x128xf32> to vector<8x128xf32>
    %31 = arith.addf %28, %30 : vector<8x128xf32>
    %cst_30 = arith.constant 0.000000e+00 : f32
    %32 = vector.broadcast %cst_30 : f32 to vector<8x128xf32>
    %33 = arith.maximumf %31, %32 : vector<8x128xf32>
    %c0_31 = arith.constant 0 : index
    %c0_32 = arith.constant 0 : index
    %c0_33 = arith.constant 0 : index
    %34 = vector.load %arg9[%c0_31, %c0_32, %c0_33] : memref<1x8x128xf32, #tpu.memory_space<vmem>>, vector<1x8x128xf32>
    %35 = vector.shape_cast %34 : vector<1x8x128xf32> to vector<8x128xf32>
    %36 = vector.shape_cast %33 : vector<8x128xf32> to vector<1x8x128xf32>
    tpu.vector_store %arg9[%c0_31, %c0_32, %c0_33], %36 {strides = array<i32>} : memref<1x8x128xf32, #tpu.memory_space<vmem>>, vector<1x8x128xf32>,
    return
  }
  func.func @transform_0(%arg0: i32) -> (i32, i32, i32) {
    %c0_i32 = arith.constant 0 : i32
    %c0_i32_0 = arith.constant 0 : i32
    %c0_i32_1 = arith.constant 0 : i32
    return %arg0, %c0_i32, %c0_i32_0 : i32, i32, i32
  }
  func.func @transform_1(%arg0: i32) -> (i32, i32) {
    %c0_i32 = arith.constant 0 : i32
    %c0_i32_0 = arith.constant 0 : i32
    %c0_i32_1 = arith.constant 0 : i32
    return %c0_i32, %c0_i32_0 : i32, i32
  }
  func.func @transform_2(%arg0: i32) -> (i32, i32) {
    %c0_i32 = arith.constant 0 : i32
    %c0_i32_0 = arith.constant 0 : i32
    %c0_i32_1 = arith.constant 0 : i32
    return %c0_i32, %c0_i32_0 : i32, i32
  }
  func.func @transform_3(%arg0: i32) -> (i32, i32) {
    %c0_i32 = arith.constant 0 : i32
    %c0_i32_0 = arith.constant 0 : i32
    %c0_i32_1 = arith.constant 0 : i32
    return %c0_i32, %c0_i32_0 : i32, i32
  }
  func.func @transform_4(%arg0: i32) -> (i32, i32) {
    %c0_i32 = arith.constant 0 : i32
    %c0_i32_0 = arith.constant 0 : i32
    %c0_i32_1 = arith.constant 0 : i32
    return %c0_i32, %c0_i32_0 : i32, i32
  }
  func.func @transform_5(%arg0: i32) -> (i32, i32) {
    %c0_i32 = arith.constant 0 : i32
    %c0_i32_0 = arith.constant 0 : i32
    %c0_i32_1 = arith.constant 0 : i32
    return %c0_i32, %c0_i32_0 : i32, i32
  }
  func.func @transform_6(%arg0: i32) -> (i32, i32) {
    %c0_i32 = arith.constant 0 : i32
    %c0_i32_0 = arith.constant 0 : i32
    %c0_i32_1 = arith.constant 0 : i32
    return %c0_i32, %c0_i32_0 : i32, i32
  }
  func.func @transform_7(%arg0: i32) -> (i32, i32) {
    %c0_i32 = arith.constant 0 : i32
    %c0_i32_0 = arith.constant 0 : i32
    %c0_i32_1 = arith.constant 0 : i32
    return %c0_i32, %c0_i32_0 : i32, i32
  }
  func.func @transform_8(%arg0: i32) -> (i32, i32, i32) {
    %c0_i32 = arith.constant 0 : i32
    %c0_i32_0 = arith.constant 0 : i32
    %c0_i32_1 = arith.constant 0 : i32
    return %arg0, %c0_i32, %c0_i32_0 : i32, i32, i32
  }
}

</mosaic_0001>

<llo_original>
// kernel: tpu_custom_call.1
$region0: #{tpu_custom_call.1}
  #allocation0 [shape = 'u32[]', space=smem, size = 0x4, offset = 0x4, fixed_abs, tag = 'smem constant byte address 0x4 - core index']
  #allocation1 [shape = 'u32[144,128]{1,0:T(1,128)}', space=vmem, size = 0x12000, scoped, tag = 'internal scratch']
  #allocation2 [shape = 'f32[10,128]{1,0:T(8,128)}', space=vmem, size = 0x2000, scoped, tag = 'scratch operand']
  %s0 = inlined_call_operand.vmem [shape: f32[2,8,128], index: 0, kind: input, shape index: {}]
  %s1 = inlined_call_operand.vmem [shape: f32[64,128], index: 1, kind: input, shape index: {}]
  %s2 = inlined_call_operand.vmem [shape: f32[1,128], index: 2, kind: input, shape index: {}]
  %s3 = inlined_call_operand.vmem [shape: f32[384,64], index: 3, kind: input, shape index: {}]
  %s4 = inlined_call_operand.vmem [shape: f32[1,64], index: 4, kind: input, shape index: {}]
  %s5 = inlined_call_operand.vmem [shape: f32[64,128], index: 5, kind: input, shape index: {}]
  %s6 = inlined_call_operand.vmem [shape: f32[64,128], index: 6, kind: input, shape index: {}]
  %s7 = inlined_call_operand.vmem [shape: f32[1,128], index: 7, kind: input, shape index: {}]
  %s8 = inlined_call_operand.hbm [shape: f32[2,8,128], index: 8, kind: output, shape index: {}]
  %s9 = sld [smem:[#allocation0]]
  $region65: #{tpu_custom_call.1} parent=0
    _
  %s11 = ssub.s32 1, %s9
  %s12 = scalar_select 0, %s11, %s9
  $region1: #{tpu_custom_call.1} parent=0
    #allocation3 [shape = 'u8[8192]{0}', space=vmem, size = 0x2000, scoped, tag = 'output window, operand 0']
    #allocation4 [shape = 's32[2]{0}', space=sflag, size = 0x8, scoped, tag = 'scoped memory for tpu_custom_call.1']
    %13 = vsyncpa [#allocation4], 0
    %s14 = scalar_lea.sflag [#allocation4], 1
    %15 = vsyncpa %s14, 0
    loop: start=0, step=1, limit=4
    $region2: #{tpu_custom_call.1} parent=1 // loop_pre_header
      _
    $region3: #{tpu_custom_call.1} parent=1 // loop_header
      %s17 = sphi 0, %s21
      %p18 = scmp.ge.s32.totalorder %s17, 4
      %s27 = sphi 0, %s29
      %s30 = sphi 0, %s27
      %s31 = sphi 0, %s30
      %s47 = sphi 0, %s31
      %s51 = sphi 0, %s51
      %s53 = sphi 0, %s51
      %s54 = sphi 0, %s53
      %s68 = sphi 0, %s54
      %s72 = sphi 0, %s72
      %s74 = sphi 0, %s72
      %s75 = sphi 0, %s74
      %s89 = sphi 0, %s75
      %s93 = sphi 0, %s93
      %s95 = sphi 0, %s93
      %s96 = sphi 0, %s95
      %s110 = sphi 0, %s96
      %s114 = sphi 0, %s114
      %s116 = sphi 0, %s114
      %s117 = sphi 0, %s116
      %s131 = sphi 0, %s117
      %s135 = sphi 0, %s135
      %s137 = sphi 0, %s135
      %s138 = sphi 0, %s137
      %s152 = sphi 0, %s138
      %s156 = sphi 0, %s156
      %s158 = sphi 0, %s156
      %s159 = sphi 0, %s158
      %s173 = sphi 0, %s159
      %s177 = sphi 0, %s177
      %s179 = sphi 0, %s177
      %s180 = sphi 0, %s179
      %s194 = sphi 0, %s180
      %s200 = sphi 0, %s202
      %s203 = sphi 0, %s200
      %s204 = sphi 0, %s203
      %s220 = sphi 0, %s204
    $region4: #{tpu_custom_call.1} parent=1 // loop_header_branch
      %20 = sbr.rel (%p18) target = $region8
    $region5: #{tpu_custom_call.1} parent=1 // loop_body
      %s22 = ssub.s32 %s17, 1
      %s23 = ssub.s32 %s17, 2
      %s24 = sadd.s32 %s17, 1
      %s25 = ssub.s32 %s17, %s24
      %p26 = scmp.eq.s32.totalorder %s25, 0
      %s28 = sadd.s32 %s27, 1
      %s29 = scalar_select %p26, %s27, %s28
      %p32 = pneg %p26
      %p33 = scmp.eq.s32.totalorder %s17, 1
      %p34 = por %p32, %p33
      %p35 = scmp.ne.s32.totalorder %s27, %s30
      %p36 = scmp.eq.s32.totalorder %s17, 0
      %p37 = por %p35, %p36
      %p38 = scmp.ne.s32.totalorder %s27, %s30
      %p39 = scmp.eq.s32.totalorder %s22, 1
      %p40 = por %p38, %p39
      %p41 = scmp.ne.s32.totalorder %s30, %s31
      %p42 = scmp.eq.s32.totalorder %s22, 0
      %p43 = por %p41, %p42
      %p44 = scmp.ne.s32.totalorder %s30, %s31
      %p45 = scmp.eq.s32.totalorder %s23, 1
      %p46 = por %p44, %p45
      %p48 = scmp.ne.s32.totalorder %s31, %s47
      %p49 = scmp.eq.s32.totalorder %s23, 0
      %p50 = por %p48, %p49
      %s52 = sadd.s32 %s51, 1
      %p55 = scmp.eq.s32.totalorder %s17, 1
      %p56 = scmp.ne.s32.totalorder %s51, %s53
      %p57 = scmp.eq.s32.totalorder %s17, 0
      %p58 = por %p56, %p57
      %p59 = scmp.ne.s32.totalorder %s51, %s53
      %p60 = scmp.eq.s32.totalorder %s22, 1
      %p61 = por %p59, %p60
      %p62 = scmp.ne.s32.totalorder %s53, %s54
      %p63 = scmp.eq.s32.totalorder %s22, 0
      %p64 = por %p62, %p63
      %p65 = scmp.ne.s32.totalorder %s53, %s54
      %p66 = scmp.eq.s32.totalorder %s23, 1
      %p67 = por %p65, %p66
      %p69 = scmp.ne.s32.totalorder %s54, %s68
      %p70 = scmp.eq.s32.totalorder %s23, 0
      %p71 = por %p69, %p70
      %s73 = sadd.s32 %s72, 1
      %p76 = scmp.eq.s32.totalorder %s17, 1
      %p77 = scmp.ne.s32.totalorder %s72, %s74
      %p78 = scmp.eq.s32.totalorder %s17, 0
      %p79 = por %p77, %p78
      %p80 = scmp.ne.s32.totalorder %s72, %s74
      %p81 = scmp.eq.s32.totalorder %s22, 1
      %p82 = por %p80, %p81
      %p83 = scmp.ne.s32.totalorder %s74, %s75
      %p84 = scmp.eq.s32.totalorder %s22, 0
      %p85 = por %p83, %p84
      %p86 = scmp.ne.s32.totalorder %s74, %s75
      %p87 = scmp.eq.s32.totalorder %s23, 1
      %p88 = por %p86, %p87
      %p90 = scmp.ne.s32.totalorder %s75, %s89
      %p91 = scmp.eq.s32.totalorder %s23, 0
      %p92 = por %p90, %p91
      %s94 = sadd.s32 %s93, 1
      %p97 = scmp.eq.s32.totalorder %s17, 1
      %p98 = scmp.ne.s32.totalorder %s93, %s95
      %p99 = scmp.eq.s32.totalorder %s17, 0
      %p100 = por %p98, %p99
      %p101 = scmp.ne.s32.totalorder %s93, %s95
      %p102 = scmp.eq.s32.totalorder %s22, 1
      %p103 = por %p101, %p102
      %p104 = scmp.ne.s32.totalorder %s95, %s96
      %p105 = scmp.eq.s32.totalorder %s22, 0
      %p106 = por %p104, %p105
      %p107 = scmp.ne.s32.totalorder %s95, %s96
      %p108 = scmp.eq.s32.totalorder %s23, 1
      %p109 = por %p107, %p108
      %p111 = scmp.ne.s32.totalorder %s96, %s110
      %p112 = scmp.eq.s32.totalorder %s23, 0
      %p113 = por %p111, %p112
      %s115 = sadd.s32 %s114, 1
      %p118 = scmp.eq.s32.totalorder %s17, 1
      %p119 = scmp.ne.s32.totalorder %s114, %s116
      %p120 = scmp.eq.s32.totalorder %s17, 0
      %p121 = por %p119, %p120
      %p122 = scmp.ne.s32.totalorder %s114, %s116
      %p123 = scmp.eq.s32.totalorder %s22, 1
      %p124 = por %p122, %p123
      %p125 = scmp.ne.s32.totalorder %s116, %s117
      %p126 = scmp.eq.s32.totalorder %s22, 0
      %p127 = por %p125, %p126
      %p128 = scmp.ne.s32.totalorder %s116, %s117
      %p129 = scmp.eq.s32.totalorder %s23, 1
      %p130 = por %p128, %p129
      %p132 = scmp.ne.s32.totalorder %s117, %s131
      %p133 = scmp.eq.s32.totalorder %s23, 0
      %p134 = por %p132, %p133
      %s136 = sadd.s32 %s135, 1
      %p139 = scmp.eq.s32.totalorder %s17, 1
      %p140 = scmp.ne.s32.totalorder %s135, %s137
      %p141 = scmp.eq.s32.totalorder %s17, 0
      %p142 = por %p140, %p141
      %p143 = scmp.ne.s32.totalorder %s135, %s137
      %p144 = scmp.eq.s32.totalorder %s22, 1
      %p145 = por %p143, %p144
      %p146 = scmp.ne.s32.totalorder %s137, %s138
      %p147 = scmp.eq.s32.totalorder %s22, 0
      %p148 = por %p146, %p147
      %p149 = scmp.ne.s32.totalorder %s137, %s138
      %p150 = scmp.eq.s32.totalorder %s23, 1
      %p151 = por %p149, %p150
      %p153 = scmp.ne.s32.totalorder %s138, %s152
      %p154 = scmp.eq.s32.totalorder %s23, 0
      %p155 = por %p153, %p154
      %s157 = sadd.s32 %s156, 1
      %p160 = scmp.eq.s32.totalorder %s17, 1
      %p161 = scmp.ne.s32.totalorder %s156, %s158
      %p162 = scmp.eq.s32.totalorder %s17, 0
      %p163 = por %p161, %p162
      %p164 = scmp.ne.s32.totalorder %s156, %s158
      %p165 = scmp.eq.s32.totalorder %s22, 1
      %p166 = por %p164, %p165
      %p167 = scmp.ne.s32.totalorder %s158, %s159
      %p168 = scmp.eq.s32.totalorder %s22, 0
      %p169 = por %p167, %p168
      %p170 = scmp.ne.s32.totalorder %s158, %s159
      %p171 = scmp.eq.s32.totalorder %s23, 1
      %p172 = por %p170, %p171
      %p174 = scmp.ne.s32.totalorder %s159, %s173
      %p175 = scmp.eq.s32.totalorder %s23, 0
      %p176 = por %p174, %p175
      %s178 = sadd.s32 %s177, 1
      %p181 = scmp.eq.s32.totalorder %s17, 1
      %p182 = scmp.ne.s32.totalorder %s177, %s179
      %p183 = scmp.eq.s32.totalorder %s17, 0
      %p184 = por %p182, %p183
      %p185 = scmp.ne.s32.totalorder %s177, %s179
      %p186 = scmp.eq.s32.totalorder %s22, 1
      %p187 = por %p185, %p186
      %p188 = scmp.ne.s32.totalorder %s179, %s180
      %p189 = scmp.eq.s32.totalorder %s22, 0
      %p190 = por %p188, %p189
      %p191 = scmp.ne.s32.totalorder %s179, %s180
      %p192 = scmp.eq.s32.totalorder %s23, 1
      %p193 = por %p191, %p192
      %p195 = scmp.ne.s32.totalorder %s180, %s194
      %p196 = scmp.eq.s32.totalorder %s23, 0
      %p197 = por %p195, %p196
      %s198 = ssub.s32 %s17, %s24
      %p199 = scmp.eq.s32.totalorder %s198, 0
      %s201 = sadd.s32 %s200, 1
      %s202 = scalar_select %p199, %s200, %s201
      %p205 = pneg %p199
      %p206 = scmp.eq.s32.totalorder %s17, 1
      %p207 = por %p205, %p206
      %p208 = scmp.ne.s32.totalorder %s200, %s203
      %p209 = scmp.eq.s32.totalorder %s17, 0
      %p210 = por %p208, %p209
      %p211 = scmp.ne.s32.totalorder %s200, %s203
      %p212 = scmp.eq.s32.totalorder %s22, 1
      %p213 = por %p211, %p212
      %p214 = scmp.ne.s32.totalorder %s203, %s204
      %p215 = scmp.eq.s32.totalorder %s22, 0
      %p216 = por %p214, %p215
      %p217 = scmp.ne.s32.totalorder %s203, %s204
      %p218 = scmp.eq.s32.totalorder %s23, 1
      %p219 = por %p217, %p218
      %p221 = scmp.ne.s32.totalorder %s204, %s220
      %p222 = scmp.eq.s32.totalorder %s23, 0
      %p223 = por %p221, %p222
      %p224 = scmp.le.s32.totalorder 1, %s17
      %p225 = scmp.lt.s32.totalorder %s17, 3
      %p226 = pnand %p224, %p225
      %p227 = pneg %p226
      // Predicated region
      $region9: #{tpu_custom_call.1} parent=5 // pred_check
        _
      $region10: #{tpu_custom_call.1} parent=5 // pred_check_branch
        %229 = sbr.rel (%p226) target = $region12
      $region11: #{tpu_custom_call.1} parent=5 // pred_region
        %s230 = ssub.s32 %s17, 1
        // Predicated region
        $region13: #{tpu_custom_call.1} parent=11 // pred_check
          %p231 = pneg %p64
        $region14: #{tpu_custom_call.1} parent=11 // pred_check_branch
          %233 = sbr.rel (%p231) target = $region16
        $region15: #{tpu_custom_call.1} parent=11 // pred_region
          _
        $region16: #{tpu_custom_call.1} parent=11 // pred_fallthru
          _
        // Predicated region
        $region17: #{tpu_custom_call.1} parent=11 // pred_check
          %p234 = pneg %p85
        $region18: #{tpu_custom_call.1} parent=11 // pred_check_branch
          %236 = sbr.rel (%p234) target = $region20
        $region19: #{tpu_custom_call.1} parent=11 // pred_region
          _
        $region20: #{tpu_custom_call.1} parent=11 // pred_fallthru
          _
        // Predicated region
        $region21: #{tpu_custom_call.1} parent=11 // pred_check
          %p237 = pneg %p106
        $region22: #{tpu_custom_call.1} parent=11 // pred_check_branch
          %239 = sbr.rel (%p237) target = $region24
        $region23: #{tpu_custom_call.1} parent=11 // pred_region
          _
        $region24: #{tpu_custom_call.1} parent=11 // pred_fallthru
          _
        // Predicated region
        $region25: #{tpu_custom_call.1} parent=11 // pred_check
          %p240 = pneg %p127
        $region26: #{tpu_custom_call.1} parent=11 // pred_check_branch
          %242 = sbr.rel (%p240) target = $region28
        $region27: #{tpu_custom_call.1} parent=11 // pred_region
          _
        $region28: #{tpu_custom_call.1} parent=11 // pred_fallthru
          _
        // Predicated region
        $region29: #{tpu_custom_call.1} parent=11 // pred_check
          %p243 = pneg %p148
        $region30: #{tpu_custom_call.1} parent=11 // pred_check_branch
          %245 = sbr.rel (%p243) target = $region32
        $region31: #{tpu_custom_call.1} parent=11 // pred_region
          _
        $region32: #{tpu_custom_call.1} parent=11 // pred_fallthru
          _
        // Predicated region
        $region33: #{tpu_custom_call.1} parent=11 // pred_check
          %p246 = pneg %p169
        $region34: #{tpu_custom_call.1} parent=11 // pred_check_branch
          %248 = sbr.rel (%p246) target = $region36
        $region35: #{tpu_custom_call.1} parent=11 // pred_region
          _
        $region36: #{tpu_custom_call.1} parent=11 // pred_fallthru
          _
        // Predicated region
        $region37: #{tpu_custom_call.1} parent=11 // pred_check
          %p249 = pneg %p190
        $region38: #{tpu_custom_call.1} parent=11 // pred_check_branch
          %251 = sbr.rel (%p249) target = $region40
        $region39: #{tpu_custom_call.1} parent=11 // pred_region
          _
        $region40: #{tpu_custom_call.1} parent=11 // pred_fallthru
          _
      $region12: #{tpu_custom_call.1} parent=5 // pred_fallthru
        _
      %p252 = scmp.lt.s32.totalorder %s17, 2
      // Predicated region
      $region41: #{tpu_custom_call.1} parent=5 // pred_check
        %p253 = pneg %p252
      $region42: #{tpu_custom_call.1} parent=5 // pred_check_branch
        %255 = sbr.rel (%p253) target = $region44
      $region43: #{tpu_custom_call.1} parent=5 // pred_region
        // Predicated region
        $region45: #{tpu_custom_call.1} parent=43 // pred_check
          %p256 = pneg %p37
        $region46: #{tpu_custom_call.1} parent=43 // pred_check_branch
          %258 = sbr.rel (%p256) target = $region48
        $region47: #{tpu_custom_call.1} parent=43 // pred_region
          %p259 = scmp.lt.s32.totalorder %s17, 1
          %s260 = scalar_select %p259, %s17, 1
          %s261 = smul.addr %s260, 8
          %s262 = scalar_lea.vmem %s0, %s261
        $region48: #{tpu_custom_call.1} parent=43 // pred_fallthru
          _
      $region44: #{tpu_custom_call.1} parent=5 // pred_fallthru
        _
      %p263 = scmp.le.s32.totalorder 1, %s17
      %p264 = scmp.lt.s32.totalorder %s17, 3
      %p265 = pnand %p263, %p264
      %p266 = pneg %p265
      // Predicated region
      $region49: #{tpu_custom_call.1} parent=5 // pred_check
        _
      $region50: #{tpu_custom_call.1} parent=5 // pred_check_branch
        %268 = sbr.rel (%p265) target = $region52
      $region51: #{tpu_custom_call.1} parent=5 // pred_region
        %s269 = ssub.s32 %s17, 1
        %p270 = scmp.lt.s32.totalorder %s22, 1
        %s271 = scalar_select %p270, %s22, 1
        %s272 = smul.addr %s271, 8
        %s273 = scalar_lea.vmem %s0, %s272
        %p274 = pneg %p43
        %p275 = pneg %p40
        %p276 = pneg %p64
        %p277 = pneg %p61
        %p278 = pneg %p85
        %p279 = pneg %p82
        %p280 = pneg %p106
        %p281 = pneg %p103
        %p282 = pneg %p127
        %p283 = pneg %p124
        %p284 = pneg %p148
        %p285 = pneg %p145
        %p286 = pneg %p169
        %p287 = pneg %p166
        %p288 = pneg %p190
        %p289 = pneg %p187
        %p290 = pneg %p216
        %p291 = pneg %p213
        %s292 = sand.u32 %s203, 1
        %s293 = scalar_lea.sflag [#allocation4], %s292
        %s294 = sand.u32 %s203, 1
        %s295 = smul.addr %s294, 8
        %s296 = scalar_lea.vmem [#allocation3], %s295
        %p297 = scmp.lt.s32.totalorder %s22, 1
        %s298 = scalar_select %p297, %s22, 1
        %s299 = smul.addr %s298, 8
        %s300 = scalar_lea.vmem %s0, %s299
        %v301 = vld [vmem:[%s300] sm:$0xff]
        %v302 = vld [vmem:[%s1] sm:$0xff]
        %v303 = vld [vmem:[%s1 + $0x8] sm:$0xff]
        %v304 = vld [vmem:[%s1 + $0x10] sm:$0xff]
        %v305 = vld [vmem:[%s1 + $0x18] sm:$0xff]
        %v306 = vld [vmem:[%s1 + $0x20] sm:$0xff]
        %v307 = vld [vmem:[%s1 + $0x28] sm:$0xff]
        %v308 = vld [vmem:[%s1 + $0x30] sm:$0xff]
        %v309 = vld [vmem:[%s1 + $0x38] sm:$0xff]
        %v310 = vld [vmem:[%s2] sm:$0x1]
        %v312 = vlaneseq
        %v313 = vshrl.u32 %v312, 7
        %v314 = vsub.s32 0, %v313
        %v315 = vrot.slane %v310, %v314
        %vm317 = vcmask 523264
        %v319 = vsel %vm317, %v301, 0
        %321 = vmatprep.subr.mxu0 0.0
        %322 = vmatpush1.msra.mxu0 0.0
        %323 = vmatprep.subr.mxu0 0.0
        %324 = vmatpush1.msra.mxu0 0.0
        %325 = vmatprep.subr.mxu0 0.0
        %326 = vmatpush1.msra.mxu0 0.0
        %327 = vmatprep.subr.mxu0 0.0
        %328 = vmatpush1.msra.mxu0 0.0
        %329 = vmatprep.subr.mxu0 0.0
        %330 = vmatpush1.msra.mxu0 0.0
        %331 = vmatprep.subr.mxu0 0.0
        %332 = vmatpush1.msra.mxu0 0.0
        %333 = vmatprep.subr.mxu0 0.0
        %334 = vmatpush1.msra.mxu0 0.0
        %335 = vmatprep.subr.mxu0 0.0
        %336 = vmatpush1.msra.mxu0 0.0
        %337 = vmatprep.subr.mxu0 0.0
        %338 = vmatpush1.msra.mxu0 %v309
        %339 = vmatprep.subr.mxu0 0.0
        %340 = vmatpush1.msra.mxu0 %v308
        %341 = vmatprep.subr.mxu0 0.0
        %342 = vmatpush1.msra.mxu0 %v307
        %343 = vmatprep.subr.mxu0 0.0
        %344 = vmatpush1.msra.mxu0 %v306
        %345 = vmatprep.subr.mxu0 0.0
        %346 = vmatpush1.msra.mxu0 %v305
        %347 = vmatprep.subr.mxu0 0.0
        %348 = vmatpush1.msra.mxu0 %v304
        %349 = vmatprep.subr.mxu0 0.0
        %350 = vmatpush1.msra.mxu0 %v303
        %351 = vmatprep.subr.mxu0 0.0
        %352 = vmatpush1.msra.mxu0 %v302
        %353 = vmatprep.subr.mxu0 0.0
        %354 = vmatpush2.msra.mxu0 0.0
        %355 = vmatprep.subr.mxu0 0.0
        %356 = vmatpush2.msra.mxu0 0.0
        %357 = vmatprep.subr.mxu0 0.0
        %358 = vmatpush2.msra.mxu0 0.0
        %359 = vmatprep.subr.mxu0 0.0
        %360 = vmatpush2.msra.mxu0 0.0
        %361 = vmatprep.subr.mxu0 0.0
        %362 = vmatpush2.msra.mxu0 0.0
        %363 = vmatprep.subr.mxu0 0.0
        %364 = vmatpush2.msra.mxu0 0.0
        %365 = vmatprep.subr.mxu0 0.0
        %366 = vmatpush2.msra.mxu0 0.0
        %367 = vmatprep.subr.mxu0 0.0
        %368 = vmatpush2.msra.mxu0 0.0
        %369 = vmatprep.subr.mxu0 0.0
        %370 = vmatpush2.msra.mxu0 0.0
        %371 = vmatprep.subr.mxu0 0.0
        %372 = vmatpush2.msra.mxu0 0.0
        %373 = vmatprep.subr.mxu0 0.0
        %374 = vmatpush2.msra.mxu0 0.0
        %375 = vmatprep.subr.mxu0 0.0
        %376 = vmatpush2.msra.mxu0 0.0
        %377 = vmatprep.subr.mxu0 0.0
        %378 = vmatpush2.msra.mxu0 0.0
        %379 = vmatprep.subr.mxu0 0.0
        %380 = vmatpush2.msra.mxu0 0.0
        %381 = vmatprep.subr.mxu0 0.0
        %382 = vmatpush2.msra.mxu0 0.0
        %383 = vmatprep.subr.mxu0 0.0
        %384 = vmatpush2.msra.mxu0 0.0
        %385 = vmatprep.mubr.f32.mxu0 0.0
        %386 = vmatmul.mubr.f32.gmra.mxu0 %v319
        %v387 = vpop.f32.mrf.mxu0
        %v388 = vadd.f32 %v315, %v387
        %v389 = vpop.f32.mrf.mxu0
        %390 = vdwg.mxu0
        %v391 = vmax.f32 %v388, 0.0
        %392 = vst [vmem:[#allocation2] sm:$0xff] 0.0
        %393 = vst [vmem:[#allocation2 + $0x8] sm:$0x3] 0.0
        %394 = vst [vmem:[#allocation2 + $0x1] sm:$0xff] %v391
        %v395 = vld [vmem:[#allocation2] sm:$0xff]
        %v396 = vld [vmem:[#allocation2 + $0x1] sm:$0xff]
        %v397 = vld [vmem:[#allocation2 + $0x2] sm:$0xff]
        %v398 = vld [vmem:[%s3] sm:$0xff]
        %v399 = vld [vmem:[%s3 + $0x8] sm:$0xff]
        %v400 = vld [vmem:[%s3 + $0x10] sm:$0xff]
        %v401 = vld [vmem:[%s3 + $0x18] sm:$0xff]
        %v402 = vld [vmem:[%s3 + $0x20] sm:$0xff]
        %v403 = vld [vmem:[%s3 + $0x28] sm:$0xff]
        %v404 = vld [vmem:[%s3 + $0x30] sm:$0xff]
        %v405 = vld [vmem:[%s3 + $0x38] sm:$0xff]
        %v406 = vld [vmem:[%s3 + $0x40] sm:$0xff]
        %v407 = vld [vmem:[%s3 + $0x48] sm:$0xff]
        %v408 = vld [vmem:[%s3 + $0x50] sm:$0xff]
        %v409 = vld [vmem:[%s3 + $0x58] sm:$0xff]
        %v410 = vld [vmem:[%s3 + $0x60] sm:$0xff]
        %v411 = vld [vmem:[%s3 + $0x68] sm:$0xff]
        %v412 = vld [vmem:[%s3 + $0x70] sm:$0xff]
        %v413 = vld [vmem:[%s3 + $0x78] sm:$0xff]
        %v414 = vld [vmem:[%s3 + $0x80] sm:$0xff]
        %v415 = vld [vmem:[%s3 + $0x88] sm:$0xff]
        %v416 = vld [vmem:[%s3 + $0x90] sm:$0xff]
        %v417 = vld [vmem:[%s3 + $0x98] sm:$0xff]
        %v418 = vld [vmem:[%s3 + $0xa0] sm:$0xff]
        %v419 = vld [vmem:[%s3 + $0xa8] sm:$0xff]
        %v420 = vld [vmem:[%s3 + $0xb0] sm:$0xff]
        %v421 = vld [vmem:[%s3 + $0xb8] sm:$0xff]
        %v422 = vld [vmem:[%s3 + $0xc0] sm:$0xff]
        %v423 = vld [vmem:[%s3 + $0xc8] sm:$0xff]
        %v424 = vld [vmem:[%s3 + $0xd0] sm:$0xff]
        %v425 = vld [vmem:[%s3 + $0xd8] sm:$0xff]
        %v426 = vld [vmem:[%s3 + $0xe0] sm:$0xff]
        %v427 = vld [vmem:[%s3 + $0xe8] sm:$0xff]
        %v428 = vld [vmem:[%s3 + $0xf0] sm:$0xff]
        %v429 = vld [vmem:[%s3 + $0xf8] sm:$0xff]
        %v430 = vld [vmem:[%s3 + $0x100] sm:$0xff]
        %v431 = vld [vmem:[%s3 + $0x108] sm:$0xff]
        %v432 = vld [vmem:[%s3 + $0x110] sm:$0xff]
        %v433 = vld [vmem:[%s3 + $0x118] sm:$0xff]
        %v434 = vld [vmem:[%s3 + $0x120] sm:$0xff]
        %v435 = vld [vmem:[%s3 + $0x128] sm:$0xff]
        %v436 = vld [vmem:[%s3 + $0x130] sm:$0xff]
        %v437 = vld [vmem:[%s3 + $0x138] sm:$0xff]
        %v438 = vld [vmem:[%s3 + $0x140] sm:$0xff]
        %v439 = vld [vmem:[%s3 + $0x148] sm:$0xff]
        %v440 = vld [vmem:[%s3 + $0x150] sm:$0xff]
        %v441 = vld [vmem:[%s3 + $0x158] sm:$0xff]
        %v442 = vld [vmem:[%s3 + $0x160] sm:$0xff]
        %v443 = vld [vmem:[%s3 + $0x168] sm:$0xff]
        %v444 = vld [vmem:[%s3 + $0x170] sm:$0xff]
        %v445 = vld [vmem:[%s3 + $0x178] sm:$0xff]
        %v446 = vld [vmem:[%s4] sm:$0x1]
        %v448 = vlaneseq
        %v449 = vshrl.u32 %v448, 7
        %v450 = vsub.s32 0, %v449
        %v451 = vrot.slane %v446, %v450
        %453 = vmatprep.subr.mxu0 0.0
        %454 = vmatpush1.msra.mxu0 %v413
        %455 = vmatprep.subr.mxu0 0.0
        %456 = vmatpush1.msra.mxu0 %v412
        %457 = vmatprep.subr.mxu0 0.0
        %458 = vmatpush1.msra.mxu0 %v411
        %459 = vmatprep.subr.mxu0 0.0
        %460 = vmatpush1.msra.mxu0 %v410
        %461 = vmatprep.subr.mxu0 0.0
        %462 = vmatpush1.msra.mxu0 %v409
        %463 = vmatprep.subr.mxu0 0.0
        %464 = vmatpush1.msra.mxu0 %v408
        %465 = vmatprep.subr.mxu0 0.0
        %466 = vmatpush1.msra.mxu0 %v407
        %467 = vmatprep.subr.mxu0 0.0
        %468 = vmatpush1.msra.mxu0 %v406
        %469 = vmatprep.subr.mxu0 0.0
        %470 = vmatpush1.msra.mxu0 %v405
        %471 = vmatprep.subr.mxu0 0.0
        %472 = vmatpush1.msra.mxu0 %v404
        %473 = vmatprep.subr.mxu0 0.0
        %474 = vmatpush1.msra.mxu0 %v403
        %475 = vmatprep.subr.mxu0 0.0
        %476 = vmatpush1.msra.mxu0 %v402
        %477 = vmatprep.subr.mxu0 0.0
        %478 = vmatpush1.msra.mxu0 %v401
        %479 = vmatprep.subr.mxu0 0.0
        %480 = vmatpush1.msra.mxu0 %v400
        %481 = vmatprep.subr.mxu0 0.0
        %482 = vmatpush1.msra.mxu0 %v399
        %483 = vmatprep.subr.mxu0 0.0
        %484 = vmatpush1.msra.mxu0 %v398
        %485 = vmatprep.subr.mxu0 0.0
        %486 = vmatpush2.msra.mxu0 %v429
        %487 = vmatprep.subr.mxu0 0.0
        %488 = vmatpush2.msra.mxu0 %v428
        %489 = vmatprep.subr.mxu0 0.0
        %490 = vmatpush2.msra.mxu0 %v427
        %491 = vmatprep.subr.mxu0 0.0
        %492 = vmatpush2.msra.mxu0 %v426
        %493 = vmatprep.subr.mxu0 0.0
        %494 = vmatpush2.msra.mxu0 %v425
        %495 = vmatprep.subr.mxu0 0.0
        %496 = vmatpush2.msra.mxu0 %v424
        %497 = vmatprep.subr.mxu0 0.0
        %498 = vmatpush2.msra.mxu0 %v423
        %499 = vmatprep.subr.mxu0 0.0
        %500 = vmatpush2.msra.mxu0 %v422
        %501 = vmatprep.subr.mxu0 0.0
        %502 = vmatpush2.msra.mxu0 %v421
        %503 = vmatprep.subr.mxu0 0.0
        %504 = vmatpush2.msra.mxu0 %v420
        %505 = vmatprep.subr.mxu0 0.0
        %506 = vmatpush2.msra.mxu0 %v419
        %507 = vmatprep.subr.mxu0 0.0
        %508 = vmatpush2.msra.mxu0 %v418
        %509 = vmatprep.subr.mxu0 0.0
        %510 = vmatpush2.msra.mxu0 %v417
        %511 = vmatprep.subr.mxu0 0.0
        %512 = vmatpush2.msra.mxu0 %v416
        %513 = vmatprep.subr.mxu0 0.0
        %514 = vmatpush2.msra.mxu0 %v415
        %515 = vmatprep.subr.mxu0 0.0
        %516 = vmatpush2.msra.mxu0 %v414
        %517 = vmatprep.mubr.f32.mxu0 %v396
        %518 = vmatmul.mubr.f32.gmra.mxu0 %v395
        %v519 = vpop.f32.mrf.mxu0
        %v520 = vadd.f32 %v451, %v519
        %v521 = vpop.f32.mrf.mxu0
        %522 = vdwg.mxu0
        %523 = vmatprep.subr.mxu0 0.0
        %524 = vmatpush1.msra.mxu0 %v445
        %525 = vmatprep.subr.mxu0 0.0
        %526 = vmatpush1.msra.mxu0 %v444
        %527 = vmatprep.subr.mxu0 0.0
        %528 = vmatpush1.msra.mxu0 %v443
        %529 = vmatprep.subr.mxu0 0.0
        %530 = vmatpush1.msra.mxu0 %v442
        %531 = vmatprep.subr.mxu0 0.0
        %532 = vmatpush1.msra.mxu0 %v441
        %533 = vmatprep.subr.mxu0 0.0
        %534 = vmatpush1.msra.mxu0 %v440
        %535 = vmatprep.subr.mxu0 0.0
        %536 = vmatpush1.msra.mxu0 %v439
        %537 = vmatprep.subr.mxu0 0.0
        %538 = vmatpush1.msra.mxu0 %v438
        %539 = vmatprep.subr.mxu0 0.0
        %540 = vmatpush1.msra.mxu0 %v437
        %541 = vmatprep.subr.mxu0 0.0
        %542 = vmatpush1.msra.mxu0 %v436
        %543 = vmatprep.subr.mxu0 0.0
        %544 = vmatpush1.msra.mxu0 %v435
        %545 = vmatprep.subr.mxu0 0.0
        %546 = vmatpush1.msra.mxu0 %v434
        %547 = vmatprep.subr.mxu0 0.0
        %548 = vmatpush1.msra.mxu0 %v433
        %549 = vmatprep.subr.mxu0 0.0
        %550 = vmatpush1.msra.mxu0 %v432
        %551 = vmatprep.subr.mxu0 0.0
        %552 = vmatpush1.msra.mxu0 %v431
        %553 = vmatprep.subr.mxu0 0.0
        %554 = vmatpush1.msra.mxu0 %v430
        %555 = vmatprep.subr.mxu0 0.0
        %556 = vmatpush2.msra.mxu0 0.0
        %557 = vmatprep.subr.mxu0 0.0
        %558 = vmatpush2.msra.mxu0 0.0
        %559 = vmatprep.subr.mxu0 0.0
        %560 = vmatpush2.msra.mxu0 0.0
        %561 = vmatprep.subr.mxu0 0.0
        %562 = vmatpush2.msra.mxu0 0.0
        %563 = vmatprep.subr.mxu0 0.0
        %564 = vmatpush2.msra.mxu0 0.0
        %565 = vmatprep.subr.mxu0 0.0
        %566 = vmatpush2.msra.mxu0 0.0
        %567 = vmatprep.subr.mxu0 0.0
        %568 = vmatpush2.msra.mxu0 0.0
        %569 = vmatprep.subr.mxu0 0.0
        %570 = vmatpush2.msra.mxu0 0.0
        %571 = vmatprep.subr.mxu0 0.0
        %572 = vmatpush2.msra.mxu0 0.0
        %573 = vmatprep.subr.mxu0 0.0
        %574 = vmatpush2.msra.mxu0 0.0
        %575 = vmatprep.subr.mxu0 0.0
        %576 = vmatpush2.msra.mxu0 0.0
        %577 = vmatprep.subr.mxu0 0.0
        %578 = vmatpush2.msra.mxu0 0.0
        %579 = vmatprep.subr.mxu0 0.0
        %580 = vmatpush2.msra.mxu0 0.0
        %581 = vmatprep.subr.mxu0 0.0
        %582 = vmatpush2.msra.mxu0 0.0
        %583 = vmatprep.subr.mxu0 0.0
        %584 = vmatpush2.msra.mxu0 0.0
        %585 = vmatprep.subr.mxu0 0.0
        %586 = vmatpush2.msra.mxu0 0.0
        %587 = vmatprep.mubr.f32.mxu0 0.0
        %588 = vmatmul.mubr.f32.gmra.mxu0 %v397
        %v589 = vpop.f32.mrf.mxu0
        %v590 = vadd.f32 %v520, %v589
        %v591 = vpop.f32.mrf.mxu0
        %592 = vdwg.mxu0
        %v593 = vmax.f32 %v590, 0.0
        %v594 = vld [vmem:[%s5] sm:$0xff]
        %v595 = vld [vmem:[%s5 + $0x8] sm:$0xff]
        %v596 = vld [vmem:[%s5 + $0x10] sm:$0xff]
        %v597 = vld [vmem:[%s5 + $0x18] sm:$0xff]
        %v598 = vld [vmem:[%s5 + $0x20] sm:$0xff]
        %v599 = vld [vmem:[%s5 + $0x28] sm:$0xff]
        %v600 = vld [vmem:[%s5 + $0x30] sm:$0xff]
        %v601 = vld [vmem:[%s5 + $0x38] sm:$0xff]
        %v602 = vld [vmem:[%s6] sm:$0xff]
        %v603 = vld [vmem:[%s6 + $0x8] sm:$0xff]
        %v604 = vld [vmem:[%s6 + $0x10] sm:$0xff]
        %v605 = vld [vmem:[%s6 + $0x18] sm:$0xff]
        %v606 = vld [vmem:[%s6 + $0x20] sm:$0xff]
        %v607 = vld [vmem:[%s6 + $0x28] sm:$0xff]
        %v608 = vld [vmem:[%s6 + $0x30] sm:$0xff]
        %v609 = vld [vmem:[%s6 + $0x38] sm:$0xff]
        %610 = vmatprep.subr.mxu0 0.0
        %611 = vmatpush1.msra.mxu0 0.0
        %612 = vmatprep.subr.mxu0 0.0
        %613 = vmatpush1.msra.mxu0 0.0
        %614 = vmatprep.subr.mxu0 0.0
        %615 = vmatpush1.msra.mxu0 0.0
        %616 = vmatprep.subr.mxu0 0.0
        %617 = vmatpush1.msra.mxu0 0.0
        %618 = vmatprep.subr.mxu0 0.0
        %619 = vmatpush1.msra.mxu0 0.0
        %620 = vmatprep.subr.mxu0 0.0
        %621 = vmatpush1.msra.mxu0 0.0
        %622 = vmatprep.subr.mxu0 0.0
        %623 = vmatpush1.msra.mxu0 0.0
        %624 = vmatprep.subr.mxu0 0.0
        %625 = vmatpush1.msra.mxu0 0.0
        %626 = vmatprep.subr.mxu0 0.0
        %627 = vmatpush1.msra.mxu0 %v609
        %628 = vmatprep.subr.mxu0 0.0
        %629 = vmatpush1.msra.mxu0 %v608
        %630 = vmatprep.subr.mxu0 0.0
        %631 = vmatpush1.msra.mxu0 %v607
        %632 = vmatprep.subr.mxu0 0.0
        %633 = vmatpush1.msra.mxu0 %v606
        %634 = vmatprep.subr.mxu0 0.0
        %635 = vmatpush1.msra.mxu0 %v605
        %636 = vmatprep.subr.mxu0 0.0
        %637 = vmatpush1.msra.mxu0 %v604
        %638 = vmatprep.subr.mxu0 0.0
        %639 = vmatpush1.msra.mxu0 %v603
        %640 = vmatprep.subr.mxu0 0.0
        %641 = vmatpush1.msra.mxu0 %v602
        %642 = vmatprep.subr.mxu0 0.0
        %643 = vmatpush2.msra.mxu0 0.0
        %644 = vmatprep.subr.mxu0 0.0
        %645 = vmatpush2.msra.mxu0 0.0
        %646 = vmatprep.subr.mxu0 0.0
        %647 = vmatpush2.msra.mxu0 0.0
        %648 = vmatprep.subr.mxu0 0.0
        %649 = vmatpush2.msra.mxu0 0.0
        %650 = vmatprep.subr.mxu0 0.0
        %651 = vmatpush2.msra.mxu0 0.0
        %652 = vmatprep.subr.mxu0 0.0
        %653 = vmatpush2.msra.mxu0 0.0
        %654 = vmatprep.subr.mxu0 0.0
        %655 = vmatpush2.msra.mxu0 0.0
        %656 = vmatprep.subr.mxu0 0.0
        %657 = vmatpush2.msra.mxu0 0.0
        %658 = vmatprep.subr.mxu0 0.0
        %659 = vmatpush2.msra.mxu0 0.0
        %660 = vmatprep.subr.mxu0 0.0
        %661 = vmatpush2.msra.mxu0 0.0
        %662 = vmatprep.subr.mxu0 0.0
        %663 = vmatpush2.msra.mxu0 0.0
        %664 = vmatprep.subr.mxu0 0.0
        %665 = vmatpush2.msra.mxu0 0.0
        %666 = vmatprep.subr.mxu0 0.0
        %667 = vmatpush2.msra.mxu0 0.0
        %668 = vmatprep.subr.mxu0 0.0
        %669 = vmatpush2.msra.mxu0 0.0
        %670 = vmatprep.subr.mxu0 0.0
        %671 = vmatpush2.msra.mxu0 0.0
        %672 = vmatprep.subr.mxu0 0.0
        %673 = vmatpush2.msra.mxu0 0.0
        %674 = vmatprep.mubr.f32.mxu0 0.0
        %675 = vmatmul.mubr.f32.gmra.mxu0 %v319
        %v676 = vpop.f32.mrf.mxu0
        %v677 = vadd.f32 0.0, %v676
        %v678 = vpop.f32.mrf.mxu0
        %679 = vdwg.mxu0
        %v681 = vsel %vm317, %v593, 0
        %683 = vmatprep.subr.mxu0 0.0
        %684 = vmatpush1.msra.mxu0 0.0
        %685 = vmatprep.subr.mxu0 0.0
        %686 = vmatpush1.msra.mxu0 0.0
        %687 = vmatprep.subr.mxu0 0.0
        %688 = vmatpush1.msra.mxu0 0.0
        %689 = vmatprep.subr.mxu0 0.0
        %690 = vmatpush1.msra.mxu0 0.0
        %691 = vmatprep.subr.mxu0 0.0
        %692 = vmatpush1.msra.mxu0 0.0
        %693 = vmatprep.subr.mxu0 0.0
        %694 = vmatpush1.msra.mxu0 0.0
        %695 = vmatprep.subr.mxu0 0.0
        %696 = vmatpush1.msra.mxu0 0.0
        %697 = vmatprep.subr.mxu0 0.0
        %698 = vmatpush1.msra.mxu0 0.0
        %699 = vmatprep.subr.mxu0 0.0
        %700 = vmatpush1.msra.mxu0 %v601
        %701 = vmatprep.subr.mxu0 0.0
        %702 = vmatpush1.msra.mxu0 %v600
        %703 = vmatprep.subr.mxu0 0.0
        %704 = vmatpush1.msra.mxu0 %v599
        %705 = vmatprep.subr.mxu0 0.0
        %706 = vmatpush1.msra.mxu0 %v598
        %707 = vmatprep.subr.mxu0 0.0
        %708 = vmatpush1.msra.mxu0 %v597
        %709 = vmatprep.subr.mxu0 0.0
        %710 = vmatpush1.msra.mxu0 %v596
        %711 = vmatprep.subr.mxu0 0.0
        %712 = vmatpush1.msra.mxu0 %v595
        %713 = vmatprep.subr.mxu0 0.0
        %714 = vmatpush1.msra.mxu0 %v594
        %715 = vmatprep.subr.mxu0 0.0
        %716 = vmatpush2.msra.mxu0 0.0
        %717 = vmatprep.subr.mxu0 0.0
        %718 = vmatpush2.msra.mxu0 0.0
        %719 = vmatprep.subr.mxu0 0.0
        %720 = vmatpush2.msra.mxu0 0.0
        %721 = vmatprep.subr.mxu0 0.0
        %722 = vmatpush2.msra.mxu0 0.0
        %723 = vmatprep.subr.mxu0 0.0
        %724 = vmatpush2.msra.mxu0 0.0
        %725 = vmatprep.subr.mxu0 0.0
        %726 = vmatpush2.msra.mxu0 0.0
        %727 = vmatprep.subr.mxu0 0.0
        %728 = vmatpush2.msra.mxu0 0.0
        %729 = vmatprep.subr.mxu0 0.0
        %730 = vmatpush2.msra.mxu0 0.0
        %731 = vmatprep.subr.mxu0 0.0
        %732 = vmatpush2.msra.mxu0 0.0
        %733 = vmatprep.subr.mxu0 0.0
        %734 = vmatpush2.msra.mxu0 0.0
        %735 = vmatprep.subr.mxu0 0.0
        %736 = vmatpush2.msra.mxu0 0.0
        %737 = vmatprep.subr.mxu0 0.0
        %738 = vmatpush2.msra.mxu0 0.0
        %739 = vmatprep.subr.mxu0 0.0
        %740 = vmatpush2.msra.mxu0 0.0
        %741 = vmatprep.subr.mxu0 0.0
        %742 = vmatpush2.msra.mxu0 0.0
        %743 = vmatprep.subr.mxu0 0.0
        %744 = vmatpush2.msra.mxu0 0.0
        %745 = vmatprep.subr.mxu0 0.0
        %746 = vmatpush2.msra.mxu0 0.0
        %747 = vmatprep.mubr.f32.mxu0 0.0
        %748 = vmatmul.mubr.f32.gmra.mxu0 %v681
        %v749 = vpop.f32.mrf.mxu0
        %v750 = vadd.f32 %v677, %v749
        %v751 = vpop.f32.mrf.mxu0
        %752 = vdwg.mxu0
        %v753 = vld [vmem:[%s7] sm:$0x1]
        %v755 = vlaneseq
        %v756 = vshrl.u32 %v755, 7
        %v757 = vsub.s32 0, %v756
        %v758 = vrot.slane %v753, %v757
        %v760 = vadd.f32 %v750, %v758
        %v761 = vmax.f32 %v760, 0.0
        %762 = vst [vmem:[%s296] sm:$0xff] %v761
        %s763 = sand.u32 %s203, 1
        %s764 = scalar_lea.sflag [#allocation4], %s763
        %s765 = sand.u32 %s203, 1
        %s766 = smul.addr %s765, 8
        %s767 = scalar_lea.vmem [#allocation3], %s766
        // Predicated region
        $region53: #{tpu_custom_call.1} parent=51 // pred_check
          %p768 = pneg %p213
        $region54: #{tpu_custom_call.1} parent=51 // pred_check_branch
          %770 = sbr.rel (%p768) target = $region56
        $region55: #{tpu_custom_call.1} parent=51 // pred_region
          %s772 = ssub.s32 128, 128
          %773 = vsyncadd %s764, %s772
          %s774 = smul.addr %s22, 128
          %s775 = scalar_lea.hbm %s8, %s774
          %s777 = sshll.u32 %s767, 4
          %s778 = int_to_ptr.vmem [resolvable:$true] %s777
          %780 = dma.vmem_to_hbm [thread:$0]  %s778, 128, %s775, %s764
        $region56: #{tpu_custom_call.1} parent=51 // pred_fallthru
          _
      $region52: #{tpu_custom_call.1} parent=5 // pred_fallthru
        _
      %p781 = scmp.le.s32.totalorder 2, %s17
      // Predicated region
      $region57: #{tpu_custom_call.1} parent=5 // pred_check
        %p782 = pneg %p781
      $region58: #{tpu_custom_call.1} parent=5 // pred_check_branch
        %784 = sbr.rel (%p782) target = $region60
      $region59: #{tpu_custom_call.1} parent=5 // pred_region
        %s785 = ssub.s32 %s17, 2
        // Predicated region
        $region61: #{tpu_custom_call.1} parent=59 // pred_check
          %p786 = pneg %p219
        $region62: #{tpu_custom_call.1} parent=59 // pred_check_branch
          %788 = sbr.rel (%p786) target = $region64
        $region63: #{tpu_custom_call.1} parent=59 // pred_region
          %s789 = sand.u32 %s204, 1
          %s790 = scalar_lea.sflag [#allocation4], %s789
          %s791 = sand.u32 %s204, 1
          %s792 = smul.addr %s791, 8
          %s793 = scalar_lea.vmem [#allocation3], %s792
          %794 = dma.done %s790, 128
        $region64: #{tpu_custom_call.1} parent=59 // pred_fallthru
          _
      $region60: #{tpu_custom_call.1} parent=5 // pred_fallthru
        _
    $region6: #{tpu_custom_call.1} parent=1 // loop_footer
      %s21 = sadd.s32 1, %s17
    $region7: #{tpu_custom_call.1} parent=1 // loop_footer_branch
      %16 = sbr.rel target = $region3
    $region8: #{tpu_custom_call.1} parent=1 // loop_exit
      _
    %795 = vsyncpa [#allocation4], 1
    %s796 = scalar_lea.sflag [#allocation4], 1
    %797 = vsyncpa %s796, 1

</llo_original>
